<compile_context>
chip_gen: v7x
topology: tpu7x:2x2x1
jax: 0.10.0
libtpu: 0.0.40
codegen_flags: <defaults>
</compile_context>

<pallas_src>
import jax
import jax.numpy as jnp
from jax import lax
from jax.experimental import pallas as pl
from jax.experimental.pallas import tpu as pltpu


def _round_up(x, m):
    return ((x + m - 1) // m) * m


def _decoder_kernel(cell_ref, w_ref, drug_ref, out_ref, cw_ref):
    # Hoist (tm, L) @ (L, L) out of the inner N loop: only recompute when the
    # N-tile index restarts (i.e. once per M tile).
    @pl.when(pl.program_id(1) == 0)
    def _():
        cw_ref[...] = jnp.dot(
            cell_ref[...], w_ref[...], preferred_element_type=jnp.float32
        )

    # (tm, L) x (tn, L) contracted over L -> (tm, tn); no explicit transpose.
    out_ref[...] = lax.dot_general(
        cw_ref[...],
        drug_ref[...],
        dimension_numbers=(((1,), (1,)), ((), ())),
        preferred_element_type=jnp.float32,
    ).astype(out_ref.dtype)


def decoder_forward(hidden, weight, cell_num, *, tm=256, tn=256):
    """Pallas implementation of Decoder.forward.

    hidden : (cell_num + drug_num, L) float32
    weight : (L, L) float32
    Returns (cell_to_latent, drug_to_latent, new_output).
    """
    cell_to_latent = hidden[:cell_num, :]
    drug_to_latent = hidden[cell_num:, :]

    M, L = cell_to_latent.shape
    N = drug_to_latent.shape[0]

    # Tile sizes: clamp to problem size, keep tm sublane-aligned (8) and tn
    # lane-dense (multiple of 128) so output stores are unmasked.
    tm = min(tm, _round_up(M, 8))
    tn = min(tn, _round_up(N, 128))

    Mp = _round_up(M, tm)
    Np = _round_up(N, tn)

    cell_p = cell_to_latent if Mp == M else jnp.pad(
        cell_to_latent, ((0, Mp - M), (0, 0)))
    drug_p = drug_to_latent if Np == N else jnp.pad(
        drug_to_latent, ((0, Np - N), (0, 0)))

    grid = (Mp // tm, Np // tn)

    out_padded = pl.pallas_call(
        _decoder_kernel,
        out_shape=jax.ShapeDtypeStruct((Mp, Np), jnp.float32),
        grid=grid,
        in_specs=[
            pl.BlockSpec((tm, L), lambda i, j: (i, 0)),   # cell tile
            pl.BlockSpec((L, L), lambda i, j: (0, 0)),    # weight (resident)
            pl.BlockSpec((tn, L), lambda i, j: (j, 0)),   # drug tile
        ],
        out_specs=pl.BlockSpec((tm, tn), lambda i, j: (i, j)),
        scratch_shapes=[pltpu.VMEM((tm, L), jnp.float32)],
        compiler_params=pltpu.CompilerParams(
            dimension_semantics=("parallel", "arbitrary"),
            vmem_limit_bytes=48 << 20,
        ),
    )(cell_p, weight, drug_p)

    new_output = out_padded[:M, :N]
    return cell_to_latent, drug_to_latent, new_output


if __name__ == "__main__":
    # Small, module-consistent shapes.
    cell_num = 16          # size1[0]
    drug_num = 24          # size2[0]
    latent_factor_num = 32

    key = jax.random.PRNGKey(0)
    k_hidden, k_weight = jax.random.split(key)

    hidden = jax.random.normal(
        k_hidden, (cell_num + drug_num, latent_factor_num), dtype=jnp.float32
    )
    # Deterministic stand-in for nn.Parameter(torch.randn(L, L))
    weight = jax.random.normal(
        k_weight, (latent_factor_num, latent_factor_num), dtype=jnp.float32
    )

    cell_to_latent, drug_to_latent, new_output = decoder_forward(
        hidden, weight, cell_num
    )
    jax.block_until_ready(new_output)

    # Reference check in plain JAX.
    ref = (hidden[:cell_num] @ weight) @ hidden[cell_num:].T
    assert new_output.shape == (cell_num, drug_num)
    assert cell_to_latent.shape == (cell_num, latent_factor_num)
    assert drug_to_latent.shape == (drug_num, latent_factor_num)
    assert jnp.allclose(new_output, ref, atol=1e-3, rtol=1e-3), (
        float(jnp.max(jnp.abs(new_output - ref)))
    )

    print("KERNEL_OK")
</pallas_src>

<mosaic_0001>
module attributes {stable_mosaic.version = 11 : i64} {
  func.func @_decoder_kernel(%arg0: i32, %arg1: i32, %arg2: memref<16x32xf32, #tpu.memory_space<vmem>>, %arg3: memref<32x32xf32, #tpu.memory_space<vmem>>, %arg4: memref<128x32xf32, #tpu.memory_space<vmem>>, %arg5: memref<16x128xf32, #tpu.memory_space<vmem>>, %arg6: memref<16x32xf32, #tpu.memory_space<vmem>>) attributes {dimension_semantics = [#tpu.dimension_semantics<parallel>, #tpu.dimension_semantics<arbitrary>], iteration_bounds = array<i64: 1, 1>, scalar_prefetch = 0 : i64, scratch_operands = 1 : i64, tpu.core_type = #tpu.core_type<tc>, window_params = [{transform_indices = @transform_0, window_bounds = array<i64: 16, 32>}, {pipeline_mode = #tpu.pipeline_mode<synchronous>, transform_indices = @transform_1, window_bounds = array<i64: 32, 32>}, {transform_indices = @transform_2, window_bounds = array<i64: 128, 32>}, {transform_indices = @transform_3, window_bounds = array<i64: 16, 128>}]} {
    %c0_i32 = arith.constant 0 : i32
    %0 = arith.cmpi eq, %arg1, %c0_i32 : i32
    %1 = arith.extui %0 : i1 to i32
    %c0_i32_0 = arith.constant 0 : i32
    %2 = arith.cmpi ne, %1, %c0_i32_0 : i32
    scf.if %2 {
      %c0_6 = arith.constant 0 : index
      %c0_7 = arith.constant 0 : index
      %7 = vector.load %arg2[%c0_6, %c0_7] : memref<16x32xf32, #tpu.memory_space<vmem>>, vector<16x32xf32>
      %c0_8 = arith.constant 0 : index
      %c0_9 = arith.constant 0 : index
      %8 = vector.load %arg3[%c0_8, %c0_9] : memref<32x32xf32, #tpu.memory_space<vmem>>, vector<32x32xf32>
      %cst_10 = arith.constant dense<0.000000e+00> : vector<16x32xf32>
      %9 = tpu.matmul %7, %8, %cst_10 {dimension_numbers = #tpu.dot_dimension_numbers<[1], [0], [0], [1], [0, 0, 1, 1], [], []>} : vector<16x32xf32>, vector<32x32xf32>, vector<16x32xf32> -> vector<16x32xf32>
      %c0_11 = arith.constant 0 : index
      %c0_12 = arith.constant 0 : index
      %10 = vector.load %arg6[%c0_11, %c0_12] : memref<16x32xf32, #tpu.memory_space<vmem>>, vector<16x32xf32>
      tpu.vector_store %arg6[%c0_11, %c0_12], %9 {strides = array<i32>} : memref<16x32xf32, #tpu.memory_space<vmem>>, vector<16x32xf32>,
    } else {
    }
    %c0 = arith.constant 0 : index
    %c0_1 = arith.constant 0 : index
    %3 = vector.load %arg6[%c0, %c0_1] : memref<16x32xf32, #tpu.memory_space<vmem>>, vector<16x32xf32>
    %c0_2 = arith.constant 0 : index
    %c0_3 = arith.constant 0 : index
    %4 = vector.load %arg4[%c0_2, %c0_3] : memref<128x32xf32, #tpu.memory_space<vmem>>, vector<128x32xf32>
    %cst = arith.constant dense<0.000000e+00> : vector<16x128xf32>
    %5 = tpu.matmul %3, %4, %cst {dimension_numbers = #tpu.dot_dimension_numbers<[1], [1], [0], [0], [0, 0, 1, 0], [], []>} : vector<16x32xf32>, vector<128x32xf32>, vector<16x128xf32> -> vector<16x128xf32>
    %c0_4 = arith.constant 0 : index
    %c0_5 = arith.constant 0 : index
    %6 = vector.load %arg5[%c0_4, %c0_5] : memref<16x128xf32, #tpu.memory_space<vmem>>, vector<16x128xf32>
    tpu.vector_store %arg5[%c0_4, %c0_5], %5 {strides = array<i32>} : memref<16x128xf32, #tpu.memory_space<vmem>>, vector<16x128xf32>,
    return
  }
  func.func @transform_0(%arg0: i32, %arg1: i32) -> (i32, i32) {
    %c0_i32 = arith.constant 0 : i32
    %c0_i32_0 = arith.constant 0 : i32
    return %arg0, %c0_i32 : i32, i32
  }
  func.func @transform_1(%arg0: i32, %arg1: i32) -> (i32, i32) {
    %c0_i32 = arith.constant 0 : i32
    %c0_i32_0 = arith.constant 0 : i32
    %c0_i32_1 = arith.constant 0 : i32
    return %c0_i32, %c0_i32_0 : i32, i32
  }
  func.func @transform_2(%arg0: i32, %arg1: i32) -> (i32, i32) {
    %c0_i32 = arith.constant 0 : i32
    %c0_i32_0 = arith.constant 0 : i32
    return %arg1, %c0_i32 : i32, i32
  }
  func.func @transform_3(%arg0: i32, %arg1: i32) -> (i32, i32) {
    %c0_i32 = arith.constant 0 : i32
    return %arg0, %arg1 : i32, i32
  }
}

</mosaic_0001>

<llo_original>
// kernel: tpu_custom_call.1
$region0: #{tpu_custom_call.1}
  #allocation0 [shape = 'u32[]', space=smem, size = 0x4, offset = 0x4, fixed_abs, tag = 'smem constant byte address 0x4 - core index']
  #allocation1 [shape = 'u32[144,128]{1,0:T(1,128)}', space=vmem, size = 0x12000, scoped, tag = 'internal scratch']
  #allocation2 [shape = 'f32[16,32]{1,0:T(8,128)}', space=vmem, size = 0x2000, scoped, tag = 'scratch operand']
  %s0 = inlined_call_operand.vmem [shape: f32[16,32], index: 0, kind: input, shape index: {}]
  %s1 = inlined_call_operand.vmem [shape: f32[32,32], index: 1, kind: input, shape index: {}]
  %s2 = inlined_call_operand.vmem [shape: f32[128,32], index: 2, kind: input, shape index: {}]
  %s3 = inlined_call_operand.hbm [shape: f32[16,128], index: 3, kind: output, shape index: {}]
  %s4 = sld [smem:[#allocation0]]
  $region26: #{tpu_custom_call.1} parent=0
    _
  %s6 = ssub.s32 1, %s4
  %s7 = scalar_select 0, %s6, %s4
  $region1: #{tpu_custom_call.1} parent=0
    #allocation3 [shape = 'u8[8192]{0}', space=vmem, size = 0x2000, scoped, tag = 'output window, operand 0, single buffered']
    #allocation4 [shape = 's32[1]{0}', space=sflag, size = 0x4, scoped, tag = 'scoped memory for tpu_custom_call.1']
    %8 = vsyncpa [#allocation4], 0
    // Predicated region
    $region2: #{tpu_custom_call.1} parent=1 // pred_check
      _
    $region3: #{tpu_custom_call.1} parent=1 // pred_check_branch
      %10 = sbr.rel (0) target = $region5
    $region4: #{tpu_custom_call.1} parent=1 // pred_region
      _
    $region5: #{tpu_custom_call.1} parent=1 // pred_fallthru
      _
    // Predicated region
    $region6: #{tpu_custom_call.1} parent=1 // pred_check
      _
    $region7: #{tpu_custom_call.1} parent=1 // pred_check_branch
      %12 = sbr.rel (0) target = $region9
    $region8: #{tpu_custom_call.1} parent=1 // pred_region
      _
    $region9: #{tpu_custom_call.1} parent=1 // pred_fallthru
      _
    // Predicated region
    $region10: #{tpu_custom_call.1} parent=1 // pred_check
      _
    $region11: #{tpu_custom_call.1} parent=1 // pred_check_branch
      %14 = sbr.rel (0) target = $region13
    $region12: #{tpu_custom_call.1} parent=1 // pred_region
      _
    $region13: #{tpu_custom_call.1} parent=1 // pred_fallthru
      _
    %p15 = scmp.eq.s32.totalorder 0, 0
    // Predicated region
    $region14: #{tpu_custom_call.1} parent=1 // pred_check
      %p16 = pneg %p15
    $region15: #{tpu_custom_call.1} parent=1 // pred_check_branch
      %18 = sbr.rel (%p16) target = $region17
    $region16: #{tpu_custom_call.1} parent=1 // pred_region
      %v19 = vld [vmem:[%s0] sm:$0xff]
      %v20 = vld [vmem:[%s0 + $0x8] sm:$0xff]
      %v21 = vld [vmem:[%s1] sm:$0xff]
      %v22 = vld [vmem:[%s1 + $0x8] sm:$0xff]
      %v23 = vld [vmem:[%s1 + $0x10] sm:$0xff]
      %v24 = vld [vmem:[%s1 + $0x18] sm:$0xff]
      %vm25 = vcmask 261120
      %v27 = vsel %vm25, %v19, 0
      %v30 = vsel %vm25, %v20, 0
      %32 = vmatprep.subr.mxu0 0.0
      %33 = vmatpush1.msra.mxu0 %v21
      %34 = vmatprep.subr.mxu0 0.0
      %35 = vmatpush1.msra.mxu0 %v22
      %36 = vmatprep.subr.mxu0 0.0
      %37 = vmatpush1.msra.mxu0 %v23
      %38 = vmatprep.subr.mxu0 0.0
      %39 = vmatpush1.msra.mxu0 %v24
      %40 = vmatprep.subr.mxu0 0.0
      %41 = vmatpush1.msra.mxu0 0.0
      %42 = vmatprep.subr.mxu0 0.0
      %43 = vmatpush1.msra.mxu0 0.0
      %44 = vmatprep.subr.mxu0 0.0
      %45 = vmatpush1.msra.mxu0 0.0
      %46 = vmatprep.subr.mxu0 0.0
      %47 = vmatpush1.msra.mxu0 0.0
      %48 = vmatprep.subr.mxu0 0.0
      %49 = vmatpush1.msra.mxu0 0.0
      %50 = vmatprep.subr.mxu0 0.0
      %51 = vmatpush1.msra.mxu0 0.0
      %52 = vmatprep.subr.mxu0 0.0
      %53 = vmatpush1.msra.mxu0 0.0
      %54 = vmatprep.subr.mxu0 0.0
      %55 = vmatpush1.msra.mxu0 0.0
      %56 = vmatprep.subr.mxu0 0.0
      %57 = vmatpush1.msra.mxu0 0.0
      %58 = vmatprep.subr.mxu0 0.0
      %59 = vmatpush1.msra.mxu0 0.0
      %60 = vmatprep.subr.mxu0 0.0
      %61 = vmatpush1.msra.mxu0 0.0
      %62 = vmatprep.subr.mxu0 0.0
      %63 = vmatpush1.msra.mxu0 0.0
      %64 = vmatprep.subr.mxu0 0.0
      %65 = vmatpush1.msra.mxu0 0.0
      %66 = vmatprep.subr.mxu0 0.0
      %67 = vmatpush1.msra.mxu0 0.0
      %68 = vmatprep.subr.mxu0 0.0
      %69 = vmatpush1.msra.mxu0 0.0
      %70 = vmatprep.subr.mxu0 0.0
      %71 = vmatpush1.msra.mxu0 0.0
      %72 = vmatprep.subr.mxu0 0.0
      %73 = vmatpush1.msra.mxu0 0.0
      %74 = vmatprep.subr.mxu0 0.0
      %75 = vmatpush1.msra.mxu0 0.0
      %76 = vmatprep.subr.mxu0 0.0
      %77 = vmatpush1.msra.mxu0 0.0
      %78 = vmatprep.subr.mxu0 0.0
      %79 = vmatpush1.msra.mxu0 0.0
      %80 = vmatprep.subr.mxu0 0.0
      %81 = vmatpush1.msra.mxu0 0.0
      %82 = vmatprep.subr.mxu0 0.0
      %83 = vmatpush1.msra.mxu0 0.0
      %84 = vmatprep.subr.mxu0 0.0
      %85 = vmatpush1.msra.mxu0 0.0
      %86 = vmatprep.subr.mxu0 0.0
      %87 = vmatpush1.msra.mxu0 0.0
      %88 = vmatprep.subr.mxu0 0.0
      %89 = vmatpush1.msra.mxu0 0.0
      %90 = vmatprep.subr.mxu0 0.0
      %91 = vmatpush1.msra.mxu0 0.0
      %92 = vmatprep.subr.mxu0 0.0
      %93 = vmatpush1.msra.mxu0 0.0
      %94 = vmatprep.subr.mxu0 0.0
      %95 = vmatpush1.msra.mxu0 0.0
      %96 = vmatprep.mubr.f32.mxu0 0.0
      %97 = vmatmul.mubr.f32.gmra.mrb[0].mxu0 %v27
      %v98 = vpop.f32.mrb[0].mxu0
      %v99 = vadd.f32 0.0, %v98
      %v100 = vpop.f32.mrb[0].mxu0
      %101 = vmatprep.mubr.f32.mxu0 0.0
      %102 = vmatmul.mubr.f32.gmra.mrb[0].mxu0 %v30
      %v103 = vpop.f32.mrb[0].mxu0
      %v104 = vadd.f32 0.0, %v103
      %v105 = vpop.f32.mrb[0].mxu0
      %106 = vdwg.mxu0
      %107 = vst.msk [vmem:[#allocation2] sm:$0xff] %vm25, %v99
      %108 = vst.msk [vmem:[#allocation2 + $0x8] sm:$0xff] %vm25, %v104
    $region17: #{tpu_custom_call.1} parent=1 // pred_fallthru
      _
    %v109 = vld [vmem:[#allocation2] sm:$0xff]
    %v110 = vld [vmem:[#allocation2 + $0x8] sm:$0xff]
    %v111 = vld [vmem:[%s2] sm:$0xff]
    %v112 = vld [vmem:[%s2 + $0x8] sm:$0xff]
    %v113 = vld [vmem:[%s2 + $0x10] sm:$0xff]
    %v114 = vld [vmem:[%s2 + $0x18] sm:$0xff]
    %v115 = vld [vmem:[%s2 + $0x20] sm:$0xff]
    %v116 = vld [vmem:[%s2 + $0x28] sm:$0xff]
    %v117 = vld [vmem:[%s2 + $0x30] sm:$0xff]
    %v118 = vld [vmem:[%s2 + $0x38] sm:$0xff]
    %v119 = vld [vmem:[%s2 + $0x40] sm:$0xff]
    %v120 = vld [vmem:[%s2 + $0x48] sm:$0xff]
    %v121 = vld [vmem:[%s2 + $0x50] sm:$0xff]
    %v122 = vld [vmem:[%s2 + $0x58] sm:$0xff]
    %v123 = vld [vmem:[%s2 + $0x60] sm:$0xff]
    %v124 = vld [vmem:[%s2 + $0x68] sm:$0xff]
    %v125 = vld [vmem:[%s2 + $0x70] sm:$0xff]
    %v126 = vld [vmem:[%s2 + $0x78] sm:$0xff]
    %vm127 = vcmask 261120
    %v129 = vsel %vm127, %v109, 0
    %v132 = vsel %vm127, %v110, 0
    %v135 = vsel %vm127, %v111, 0
    %v138 = vsel %vm127, %v112, 0
    %v141 = vsel %vm127, %v113, 0
    %v144 = vsel %vm127, %v114, 0
    %v147 = vsel %vm127, %v115, 0
    %v150 = vsel %vm127, %v116, 0
    %v153 = vsel %vm127, %v117, 0
    %v156 = vsel %vm127, %v118, 0
    %v159 = vsel %vm127, %v119, 0
    %v162 = vsel %vm127, %v120, 0
    %v165 = vsel %vm127, %v121, 0
    %v168 = vsel %vm127, %v122, 0
    %v171 = vsel %vm127, %v123, 0
    %v174 = vsel %vm127, %v124, 0
    %v177 = vsel %vm127, %v125, 0
    %v180 = vsel %vm127, %v126, 0
    %182 = vmatprep.subr.mxu0 0.0
    %183 = vmatpush1.xpose.msra.mxu0 %v135
    %184 = vmatprep.subr.mxu0 0.0
    %185 = vmatpush1.xpose.msra.mxu0 %v138
    %186 = vmatprep.subr.mxu0 0.0
    %187 = vmatpush1.xpose.msra.mxu0 %v141
    %188 = vmatprep.subr.mxu0 0.0
    %189 = vmatpush1.xpose.msra.mxu0 %v144
    %190 = vmatprep.subr.mxu0 0.0
    %191 = vmatpush1.xpose.msra.mxu0 %v147
    %192 = vmatprep.subr.mxu0 0.0
    %193 = vmatpush1.xpose.msra.mxu0 %v150
    %194 = vmatprep.subr.mxu0 0.0
    %195 = vmatpush1.xpose.msra.mxu0 %v153
    %196 = vmatprep.subr.mxu0 0.0
    %197 = vmatpush1.xpose.msra.mxu0 %v156
    %198 = vmatprep.subr.mxu0 0.0
    %199 = vmatpush1.xpose.msra.mxu0 %v159
    %200 = vmatprep.subr.mxu0 0.0
    %201 = vmatpush1.xpose.msra.mxu0 %v162
    %202 = vmatprep.subr.mxu0 0.0
    %203 = vmatpush1.xpose.msra.mxu0 %v165
    %204 = vmatprep.subr.mxu0 0.0
    %205 = vmatpush1.xpose.msra.mxu0 %v168
    %206 = vmatprep.subr.mxu0 0.0
    %207 = vmatpush1.xpose.msra.mxu0 %v171
    %208 = vmatprep.subr.mxu0 0.0
    %209 = vmatpush1.xpose.msra.mxu0 %v174
    %210 = vmatprep.subr.mxu0 0.0
    %211 = vmatpush1.xpose.msra.mxu0 %v177
    %212 = vmatprep.subr.mxu0 0.0
    %213 = vmatpush1.xpose.msra.mxu0 %v180
    %214 = vmatprep.subr.mxu0 0.0
    %215 = vmatpush1.xpose.msra.mxu0 0.0
    %216 = vmatprep.subr.mxu0 0.0
    %217 = vmatpush1.xpose.msra.mxu0 0.0
    %218 = vmatprep.subr.mxu0 0.0
    %219 = vmatpush1.xpose.msra.mxu0 0.0
    %220 = vmatprep.subr.mxu0 0.0
    %221 = vmatpush1.xpose.msra.mxu0 0.0
    %222 = vmatprep.subr.mxu0 0.0
    %223 = vmatpush1.xpose.msra.mxu0 0.0
    %224 = vmatprep.subr.mxu0 0.0
    %225 = vmatpush1.xpose.msra.mxu0 0.0
    %226 = vmatprep.subr.mxu0 0.0
    %227 = vmatpush1.xpose.msra.mxu0 0.0
    %228 = vmatprep.subr.mxu0 0.0
    %229 = vmatpush1.xpose.msra.mxu0 0.0
    %230 = vmatprep.subr.mxu0 0.0
    %231 = vmatpush1.xpose.msra.mxu0 0.0
    %232 = vmatprep.subr.mxu0 0.0
    %233 = vmatpush1.xpose.msra.mxu0 0.0
    %234 = vmatprep.subr.mxu0 0.0
    %235 = vmatpush1.xpose.msra.mxu0 0.0
    %236 = vmatprep.subr.mxu0 0.0
    %237 = vmatpush1.xpose.msra.mxu0 0.0
    %238 = vmatprep.subr.mxu0 0.0
    %239 = vmatpush1.xpose.msra.mxu0 0.0
    %240 = vmatprep.subr.mxu0 0.0
    %241 = vmatpush1.xpose.msra.mxu0 0.0
    %242 = vmatprep.subr.mxu0 0.0
    %243 = vmatpush1.xpose.msra.mxu0 0.0
    %244 = vmatprep.subr.mxu0 0.0
    %245 = vmatpush1.xpose.msra.mxu0 0.0
    %246 = vmatprep.mubr.f32.mxu0 0.0
    %247 = vmatmul.mubr.f32.gmra.mrb[0].mxu0 %v129
    %v248 = vpop.f32.mrb[0].mxu0
    %v249 = vadd.f32 0.0, %v248
    %v250 = vpop.f32.mrb[0].mxu0
    %251 = vmatprep.mubr.f32.mxu0 0.0
    %252 = vmatmul.mubr.f32.gmra.mrb[0].mxu0 %v132
    %v253 = vpop.f32.mrb[0].mxu0
    %v254 = vadd.f32 0.0, %v253
    %v255 = vpop.f32.mrb[0].mxu0
    %256 = vdwg.mxu0
    %257 = vst [vmem:[#allocation3] sm:$0xff] %v249
    %258 = vst [vmem:[#allocation3 + $0x8] sm:$0xff] %v254
    // Predicated region
    $region18: #{tpu_custom_call.1} parent=1 // pred_check
      _
    $region19: #{tpu_custom_call.1} parent=1 // pred_check_branch
      %260 = sbr.rel (0) target = $region21
    $region20: #{tpu_custom_call.1} parent=1 // pred_region
      %s262 = ssub.s32 256, 256
      %263 = vsyncadd [#allocation4], %s262
      %s264 = sshll.u32 [#allocation3], 4
      %s265 = int_to_ptr.vmem [resolvable:$true] %s264
      %270 = dma.vmem_to_hbm [thread:$0]  %s265, 256, %s3, [#allocation4], 128, 128, 8
    $region21: #{tpu_custom_call.1} parent=1 // pred_fallthru
      _
    // Predicated region
    $region22: #{tpu_custom_call.1} parent=1 // pred_check
      _
    $region23: #{tpu_custom_call.1} parent=1 // pred_check_branch
      %272 = sbr.rel (0) target = $region25
    $region24: #{tpu_custom_call.1} parent=1 // pred_region
      %273 = dma.done [#allocation4], 256
    $region25: #{tpu_custom_call.1} parent=1 // pred_fallthru
      _
    %274 = vsyncpa [#allocation4], 1

</llo_original>
